<compile_context>
chip_gen: v7x
topology: tpu7x:2x2x1
jax: 0.10.0
libtpu: 0.0.40
codegen_flags: <defaults>
</compile_context>

<pallas_src>
import functools

import jax
import jax.numpy as jnp
from jax.experimental import pallas as pl
from jax.experimental.pallas import tpu as pltpu

_MIB = 1024 * 1024


def _round_up(x, m):
    return (x + m - 1) // m * m


def _tpu_generation():
    """Best-effort TPU generation detection; conservative fallback otherwise."""
    try:
        kind = jax.devices()[0].device_kind.lower()
    except Exception:  # pragma: no cover - defensive
        return "unknown"
    if "v5" in kind:
        return "v5e"
    if "v6" in kind:
        return "v6e"
    if "v7" in kind:
        return "v7x"
    return "unknown"


def _gen_caps(gen):
    """(tb_cap, tn candidates, tile-footprint budget, vmem_limit_bytes)."""
    if gen == "v6e":
        # 128 MiB physical VMEM, ~650 FLOP/byte roofline -> go big.
        return 512, (1024, 512, 256, 128), 96 * _MIB, 112 * _MIB
    if gen == "v5e":
        # 128 MiB VMEM but compute roofline reached around tb~256.
        return 256, (1024, 512, 256, 128), 96 * _MIB, 112 * _MIB
    if gen == "v7x":
        # Only 64 MiB VMEM per TC -> keep the double-buffered footprint small.
        return 512, (512, 256, 128), 44 * _MIB, 56 * _MIB
    # Unknown chip: stay conservative (matches the previously-clean 32 MiB).
    return 256, (512, 256, 128), 24 * _MIB, 32 * _MIB


def _tile_footprint(tb, tk, tn, split_k, out_itemsize, compute_itemsize=2):
    """Approximate double-buffered VMEM bytes for one pipeline stage."""
    fp = 2 * tb * tk * compute_itemsize        # x tiles (double-buffered)
    fp += 2 * tk * tn * compute_itemsize       # weight tiles
    fp += 2 * tn * 4                           # bias slice (f32)
    fp += 2 * tb * tn * out_itemsize           # output tiles
    if split_k:
        fp += tb * tn * 4                      # f32 accumulator scratch
    return fp


def _tb_options(tb0):
    opts = []
    t = max(8, _round_up(tb0, 8))
    while True:
        if t not in opts:
            opts.append(t)
        if t <= 8:
            break
        t = max(8, _round_up(t // 2, 8))
    return opts


def _choose_tiles(B, K_pad, N_pad, gen, out_itemsize):
    tb_cap, tn_cands, budget, vmem_limit = _gen_caps(gen)
    tb0 = min(tb_cap, _round_up(B, 8))
    tn_opts = [c for c in tn_cands if N_pad % c == 0] or [N_pad]
    tk_opts = [c for c in (2048, 1024, 512, 256, 128) if K_pad % c == 0] or [K_pad]

    # Preferred: full-K tile -> one MXU pass per (i, j), no accumulator RMW,
    # no K grid axis.
    for tb in _tb_options(tb0):
        for tn in tn_opts:
            if _tile_footprint(tb, K_pad, tn, False, out_itemsize) <= budget:
                return tb, K_pad, tn, False, vmem_limit

    # Fallback for very large K: split the contraction dim, f32 accumulator.
    for tb in _tb_options(tb0):
        for tn in tn_opts:
            for tk in tk_opts:
                if _tile_footprint(tb, tk, tn, True, out_itemsize) <= budget:
                    return tb, tk, tn, True, vmem_limit

    return 8, tk_opts[-1], tn_opts[-1], True, vmem_limit


def _ensure_two_parallel_blocks(tb, tn, B, N_pad, gen):
    """On v7x (2 TensorCores) make sure the 'parallel' axes have >=2 blocks."""
    if gen != "v7x":
        return tb, tn
    b_blocks = -(-B // tb)
    n_blocks = N_pad // tn
    if b_blocks * n_blocks >= 2:
        return tb, tn
    smaller_tn = [c for c in (512, 256, 128) if N_pad % c == 0 and N_pad // c >= 2]
    if smaller_tn:
        return tb, smaller_tn[0]
    if B >= 16:
        return _round_up((B + 1) // 2, 8), tn
    return tb, tn


def _linear_kernel_fullk(x_ref, wt_ref, b_ref, o_ref):
    # x_ref : (tb, K_pad) bf16   wt_ref: (K_pad, tn) bf16
    # b_ref : (1, tn) f32        o_ref : (tb, tn) out dtype
    o_ref[...] = (
        jnp.dot(x_ref[...], wt_ref[...], preferred_element_type=jnp.float32)
        + b_ref[...]
    ).astype(o_ref.dtype)


def _linear_kernel_splitk(x_ref, wt_ref, b_ref, o_ref, acc_ref):
    # Fallback path when the full-K weight tile does not fit VMEM.
    k = pl.program_id(2)

    @pl.when(k == 0)
    def _init():
        acc_ref[...] = jnp.zeros_like(acc_ref)

    acc_ref[...] += jnp.dot(x_ref[...], wt_ref[...],
                            preferred_element_type=jnp.float32)

    @pl.when(k == pl.num_programs(2) - 1)
    def _finalize():
        o_ref[...] = (acc_ref[...] + b_ref[...]).astype(o_ref.dtype)


def prepare_decoder_params(weight, bias, *, compute_dtype=jnp.bfloat16):
    """One-time (init-time) parameter layout prep — NOT done per forward call.

    weight: (num_classes, input_size)   (PyTorch nn.Linear layout)
    bias:   (num_classes,)
    Returns:
      wt : (K_pad, N_pad) compute_dtype  -- transposed + zero-padded (lane-dense)
      b2 : (1, N_pad)     float32        -- zero-padded
    """
    num_classes, in_size = weight.shape
    n_pad = _round_up(num_classes, 128)
    k_pad = _round_up(in_size, 128)
    wt = jnp.zeros((k_pad, n_pad), dtype=compute_dtype)
    wt = wt.at[:in_size, :num_classes].set(weight.T.astype(compute_dtype))
    b2 = jnp.zeros((1, n_pad), dtype=jnp.float32)
    b2 = b2.at[0, :num_classes].set(bias.astype(jnp.float32))
    return wt, b2


@functools.partial(jax.jit, static_argnames=("num_classes", "out_dtype"))
def linear_decoder(x, wt, b2, *, num_classes, out_dtype=None):
    """x: (B, input_size); wt, b2 from prepare_decoder_params. Returns (B, num_classes)."""
    B, K = x.shape
    K_pad, N_pad = wt.shape
    compute_dtype = wt.dtype
    out_dtype = jnp.dtype(out_dtype) if out_dtype is not None else x.dtype

    gen = _tpu_generation()
    tb, tk, tn, split_k, vmem_limit = _choose_tiles(
        B, K_pad, N_pad, gen, jnp.dtype(out_dtype).itemsize)
    tb, tn = _ensure_two_parallel_blocks(tb, tn, B, N_pad, gen)
    B_pad = _round_up(B, tb)

    # Only materialize a padded/cast copy of the activations when actually
    # needed; the aligned common case just casts (or passes through).
    if (B_pad != B) or (K_pad != K):
        x_p = jnp.zeros((B_pad, K_pad), dtype=compute_dtype)
        x_p = x_p.at[:B, :K].set(x.astype(compute_dtype))
    else:
        x_p = x.astype(compute_dtype)

    b_blocks = B_pad // tb
    n_blocks = N_pad // tn
    out_bytes = B_pad * N_pad * jnp.dtype(out_dtype).itemsize

    if not split_k:
        # Grid ordered (class-tile j OUTER, batch-tile i INNER): the weight
        # block index (0, j) is unchanged across the inner axis, so Pallas
        # keeps the weight tile resident in VMEM and only x / out stream.
        grid = (n_blocks, b_blocks)
        cost = pl.CostEstimate(
            flops=2 * B_pad * K_pad * N_pad,
            transcendentals=0,
            bytes_accessed=(x_p.size * x_p.dtype.itemsize * n_blocks
                            + wt.size * wt.dtype.itemsize
                            + b2.size * b2.dtype.itemsize
                            + out_bytes),
        )
        out = pl.pallas_call(
            _linear_kernel_fullk,
            out_shape=jax.ShapeDtypeStruct((B_pad, N_pad), out_dtype),
            grid_spec=pltpu.PrefetchScalarGridSpec(
                num_scalar_prefetch=0,
                grid=grid,
                in_specs=[
                    pl.BlockSpec((tb, K_pad), lambda j, i: (i, 0)),   # x tile
                    pl.BlockSpec((K_pad, tn), lambda j, i: (0, j)),   # weight (resident over i)
                    pl.BlockSpec((1, tn), lambda j, i: (0, j)),       # bias slice
                ],
                out_specs=pl.BlockSpec((tb, tn), lambda j, i: (i, j)),
            ),
            compiler_params=pltpu.CompilerParams(
                dimension_semantics=("parallel", "parallel"),
                vmem_limit_bytes=vmem_limit,
            ),
            cost_estimate=cost,
        )(x_p, wt, b2)
    else:
        k_blocks = K_pad // tk
        grid = (b_blocks, n_blocks, k_blocks)
        cost = pl.CostEstimate(
            flops=2 * B_pad * K_pad * N_pad,
            transcendentals=0,
            bytes_accessed=(x_p.size * x_p.dtype.itemsize * n_blocks
                            + wt.size * wt.dtype.itemsize * b_blocks
                            + b2.size * b2.dtype.itemsize
                            + out_bytes),
        )
        out = pl.pallas_call(
            _linear_kernel_splitk,
            out_shape=jax.ShapeDtypeStruct((B_pad, N_pad), out_dtype),
            grid_spec=pltpu.PrefetchScalarGridSpec(
                num_scalar_prefetch=0,
                grid=grid,
                in_specs=[
                    pl.BlockSpec((tb, tk), lambda i, j, k: (i, k)),   # x tile
                    pl.BlockSpec((tk, tn), lambda i, j, k: (k, j)),   # weight tile
                    pl.BlockSpec((1, tn), lambda i, j, k: (0, j)),    # bias slice
                ],
                out_specs=pl.BlockSpec((tb, tn), lambda i, j, k: (i, j)),
                scratch_shapes=[pltpu.VMEM((tb, tn), jnp.float32)],
            ),
            compiler_params=pltpu.CompilerParams(
                dimension_semantics=("parallel", "parallel", "arbitrary"),
                vmem_limit_bytes=vmem_limit,
            ),
            cost_estimate=cost,
        )(x_p, wt, b2)

    return out[:B, :num_classes]


if __name__ == "__main__":
    input_size = 256
    num_classes = 4
    batch = 8

    key = jax.random.PRNGKey(0)
    kx, kw, kb = jax.random.split(key, 3)

    # Deterministic synthetic parameters (PyTorch Linear shapes:
    # weight (num_classes, input_size), bias (num_classes,)).
    x = jax.random.normal(kx, (batch, input_size), dtype=jnp.float32)
    weight = jax.random.normal(kw, (num_classes, input_size), dtype=jnp.float32) * 0.05
    bias = jax.random.normal(kb, (num_classes,), dtype=jnp.float32) * 0.05

    # One-time parameter prep (lives at module-init time, not per forward).
    wt, b2 = prepare_decoder_params(weight, bias, compute_dtype=jnp.bfloat16)

    out = linear_decoder(x, wt, b2, num_classes=num_classes)
    out = jax.block_until_ready(out)

    # Reference checks: bf16-operand / f32-accumulate math matching the kernel
    # (tight tolerance), and full-f32 torch-equivalent math (loose tolerance,
    # since operands were cast to bf16).
    ref_bf16 = (jnp.dot(x.astype(jnp.bfloat16), weight.T.astype(jnp.bfloat16),
                        preferred_element_type=jnp.float32) + bias)
    ref_f32 = x @ weight.T + bias

    assert out.shape == (batch, num_classes)
    assert jnp.allclose(out, ref_bf16, atol=2e-3, rtol=2e-3), "mismatch vs bf16 reference"
    assert jnp.allclose(out, ref_f32, atol=3e-2, rtol=3e-2), "mismatch vs f32 reference"

    print("KERNEL_OK")
</pallas_src>

<mosaic_0001>
module attributes {stable_mosaic.version = 11 : i64} {
  func.func @_linear_kernel_fullk(%arg0: i32, %arg1: i32, %arg2: memref<8x256xbf16, #tpu.memory_space<vmem>>, %arg3: memref<256x128xbf16, #tpu.memory_space<vmem>>, %arg4: memref<1x128xf32, #tpu.memory_space<vmem>>, %arg5: memref<8x128xf32, #tpu.memory_space<vmem>>) attributes {dimension_semantics = [#tpu.dimension_semantics<parallel>, #tpu.dimension_semantics<parallel>], iteration_bounds = array<i64: 1, 1>, scalar_prefetch = 0 : i64, scratch_operands = 0 : i64, tpu.core_type = #tpu.core_type<tc>, window_params = [{transform_indices = @transform_0, window_bounds = array<i64: 8, 256>}, {transform_indices = @transform_1, window_bounds = array<i64: 256, 128>}, {transform_indices = @transform_2, window_bounds = array<i64: 1, 128>}, {transform_indices = @transform_3, window_bounds = array<i64: 8, 128>}]} {
    %c0 = arith.constant 0 : index
    %c0_0 = arith.constant 0 : index
    %0 = vector.load %arg2[%c0, %c0_0] : memref<8x256xbf16, #tpu.memory_space<vmem>>, vector<8x256xbf16>
    %c0_1 = arith.constant 0 : index
    %c0_2 = arith.constant 0 : index
    %1 = vector.load %arg3[%c0_1, %c0_2] : memref<256x128xbf16, #tpu.memory_space<vmem>>, vector<256x128xbf16>
    %cst = arith.constant dense<0.000000e+00> : vector<8x128xf32>
    %2 = tpu.matmul %0, %1, %cst {dimension_numbers = #tpu.dot_dimension_numbers<[1], [0], [0], [1], [0, 0, 1, 1], [], []>} : vector<8x256xbf16>, vector<256x128xbf16>, vector<8x128xf32> -> vector<8x128xf32>
    %c0_3 = arith.constant 0 : index
    %c0_4 = arith.constant 0 : index
    %3 = vector.load %arg4[%c0_3, %c0_4] : memref<1x128xf32, #tpu.memory_space<vmem>>, vector<1x128xf32>
    %4 = vector.broadcast %3 : vector<1x128xf32> to vector<8x128xf32>
    %5 = arith.addf %2, %4 : vector<8x128xf32>
    %c0_5 = arith.constant 0 : index
    %c0_6 = arith.constant 0 : index
    %6 = vector.load %arg5[%c0_5, %c0_6] : memref<8x128xf32, #tpu.memory_space<vmem>>, vector<8x128xf32>
    tpu.vector_store %arg5[%c0_5, %c0_6], %5 {strides = array<i32>} : memref<8x128xf32, #tpu.memory_space<vmem>>, vector<8x128xf32>,
    return
  }
  func.func @transform_0(%arg0: i32, %arg1: i32) -> (i32, i32) {
    %c0_i32 = arith.constant 0 : i32
    %c0_i32_0 = arith.constant 0 : i32
    return %arg1, %c0_i32 : i32, i32
  }
  func.func @transform_1(%arg0: i32, %arg1: i32) -> (i32, i32) {
    %c0_i32 = arith.constant 0 : i32
    %c0_i32_0 = arith.constant 0 : i32
    return %c0_i32, %arg0 : i32, i32
  }
  func.func @transform_2(%arg0: i32, %arg1: i32) -> (i32, i32) {
    %c0_i32 = arith.constant 0 : i32
    %c0_i32_0 = arith.constant 0 : i32
    return %c0_i32, %arg0 : i32, i32
  }
  func.func @transform_3(%arg0: i32, %arg1: i32) -> (i32, i32) {
    %c0_i32 = arith.constant 0 : i32
    return %arg1, %arg0 : i32, i32
  }
}

</mosaic_0001>

<llo_original>
// kernel: linear_decoder.1
$region0: #{linear_decoder.1}
  #allocation0 [shape = 'u32[]', space=smem, size = 0x4, offset = 0x4, fixed_abs, tag = 'smem constant byte address 0x4 - core index']
  #allocation1 [shape = 'u32[144,128]{1,0:T(1,128)}', space=vmem, size = 0x12000, scoped, tag = 'internal scratch']
  %s0 = inlined_call_operand.vmem [shape: bf16[8,256], index: 0, kind: input, shape index: {}]
  %s1 = inlined_call_operand.hbm [shape: bf16[256,128], index: 1, kind: input, shape index: {}]
  %s2 = inlined_call_operand.vmem [shape: f32[1,128], index: 2, kind: input, shape index: {}]
  %s3 = inlined_call_operand.vmem [shape: f32[8,128], index: 3, kind: output, shape index: {}]
  %s4 = sld [smem:[#allocation0]]
  $region26: #{linear_decoder.1} parent=0
    _
  %s6 = ssub.s32 1, %s4
  %s7 = scalar_select 0, %s6, %s4
  $region1: #{linear_decoder.1} parent=0
    #allocation2 [shape = 'u8[65536]{0}', space=vmem, size = 0x10000, scoped, tag = 'input window, operand 1, single buffered']
    #allocation3 [shape = 's32[1]{0}', space=sflag, size = 0x4, scoped, tag = 'scoped memory for linear_decoder.1']
    %8 = vsyncpa [#allocation3], 0
    // Predicated region
    $region2: #{linear_decoder.1} parent=1 // pred_check
      _
    $region3: #{linear_decoder.1} parent=1 // pred_check_branch
      %10 = sbr.rel (0) target = $region5
    $region4: #{linear_decoder.1} parent=1 // pred_region
      _
    $region5: #{linear_decoder.1} parent=1 // pred_fallthru
      _
    // Predicated region
    $region6: #{linear_decoder.1} parent=1 // pred_check
      _
    $region7: #{linear_decoder.1} parent=1 // pred_check_branch
      %12 = sbr.rel (0) target = $region9
    $region8: #{linear_decoder.1} parent=1 // pred_region
      %s14 = ssub.s32 2048, 2048
      %15 = vsyncadd [#allocation3], %s14
      %s16 = sshll.u32 [#allocation2], 4
      %s17 = int_to_ptr.vmem [resolvable:$true] %s16
      %22 = dma.hbm_to_vmem [thread:$0]  %s1, 2048, %s17, [#allocation3], 64, 64, 4
    $region9: #{linear_decoder.1} parent=1 // pred_fallthru
      _
    // Predicated region
    $region10: #{linear_decoder.1} parent=1 // pred_check
      _
    $region11: #{linear_decoder.1} parent=1 // pred_check_branch
      %24 = sbr.rel (0) target = $region13
    $region12: #{linear_decoder.1} parent=1 // pred_region
      _
    $region13: #{linear_decoder.1} parent=1 // pred_fallthru
      _
    // Predicated region
    $region14: #{linear_decoder.1} parent=1 // pred_check
      _
    $region15: #{linear_decoder.1} parent=1 // pred_check_branch
      %26 = sbr.rel (0) target = $region17
    $region16: #{linear_decoder.1} parent=1 // pred_region
      %27 = dma.done [#allocation3], 2048
    $region17: #{linear_decoder.1} parent=1 // pred_fallthru
      _
    %v29 = vld [vmem:[%s0] sm:$0xff]
    %v30 = vld [vmem:[#allocation2] sm:$0xf]
    %v31 = vld [vmem:[#allocation2 + $0x4] sm:$0xf]
    %v32 = vld [vmem:[#allocation2 + $0x8] sm:$0xf]
    %v33 = vld [vmem:[#allocation2 + $0xc] sm:$0xf]
    %v34 = vld [vmem:[#allocation2 + $0x10] sm:$0xf]
    %v35 = vld [vmem:[#allocation2 + $0x14] sm:$0xf]
    %v36 = vld [vmem:[#allocation2 + $0x18] sm:$0xf]
    %v37 = vld [vmem:[#allocation2 + $0x1c] sm:$0xf]
    %v38 = vld [vmem:[#allocation2 + $0x20] sm:$0xf]
    %v39 = vld [vmem:[#allocation2 + $0x24] sm:$0xf]
    %v40 = vld [vmem:[#allocation2 + $0x28] sm:$0xf]
    %v41 = vld [vmem:[#allocation2 + $0x2c] sm:$0xf]
    %v42 = vld [vmem:[#allocation2 + $0x30] sm:$0xf]
    %v43 = vld [vmem:[#allocation2 + $0x34] sm:$0xf]
    %v44 = vld [vmem:[#allocation2 + $0x38] sm:$0xf]
    %v45 = vld [vmem:[#allocation2 + $0x3c] sm:$0xf]
    %v46 = vld [vmem:[#allocation2 + $0x40] sm:$0xf]
    %v47 = vld [vmem:[#allocation2 + $0x44] sm:$0xf]
    %v48 = vld [vmem:[#allocation2 + $0x48] sm:$0xf]
    %v49 = vld [vmem:[#allocation2 + $0x4c] sm:$0xf]
    %v50 = vld [vmem:[#allocation2 + $0x50] sm:$0xf]
    %v51 = vld [vmem:[#allocation2 + $0x54] sm:$0xf]
    %v52 = vld [vmem:[#allocation2 + $0x58] sm:$0xf]
    %v53 = vld [vmem:[#allocation2 + $0x5c] sm:$0xf]
    %v54 = vld [vmem:[#allocation2 + $0x60] sm:$0xf]
    %v55 = vld [vmem:[#allocation2 + $0x64] sm:$0xf]
    %v56 = vld [vmem:[#allocation2 + $0x68] sm:$0xf]
    %v57 = vld [vmem:[#allocation2 + $0x6c] sm:$0xf]
    %v58 = vld [vmem:[#allocation2 + $0x70] sm:$0xf]
    %v59 = vld [vmem:[#allocation2 + $0x74] sm:$0xf]
    %v60 = vld [vmem:[#allocation2 + $0x78] sm:$0xf]
    %v61 = vld [vmem:[#allocation2 + $0x7c] sm:$0xf]
    %v62 = vld [vmem:[%s2] sm:$0x1]
    %v64 = vlaneseq
    %v65 = vshrl.u32 %v64, 7
    %v66 = vsub.s32 0, %v65
    %v67 = vrot.slane %v62, %v66
    %v70 = vunpack.c.l.b16 %v29
    %v71 = vunpack.c.h.b16 %v29
    %v72 = vpack.c.b16 %v70, %v70
    %v73 = vpack.c.b16 %v71, %v71
    %v108 = vunpack.c.l.b16 %v30
    %v109 = vunpack.c.l.b16 %v31
    %v110 = vunpack.c.l.b16 %v32
    %v111 = vunpack.c.l.b16 %v33
    %v112 = vunpack.c.l.b16 %v34
    %v113 = vunpack.c.l.b16 %v35
    %v114 = vunpack.c.l.b16 %v36
    %v115 = vunpack.c.l.b16 %v37
    %v116 = vunpack.c.l.b16 %v38
    %v117 = vunpack.c.l.b16 %v39
    %v118 = vunpack.c.l.b16 %v40
    %v119 = vunpack.c.l.b16 %v41
    %v120 = vunpack.c.l.b16 %v42
    %v121 = vunpack.c.l.b16 %v43
    %v122 = vunpack.c.l.b16 %v44
    %v123 = vunpack.c.l.b16 %v45
    %v124 = vunpack.c.l.b16 %v46
    %v125 = vunpack.c.l.b16 %v47
    %v126 = vunpack.c.l.b16 %v48
    %v127 = vunpack.c.l.b16 %v49
    %v128 = vunpack.c.l.b16 %v50
    %v129 = vunpack.c.l.b16 %v51
    %v130 = vunpack.c.l.b16 %v52
    %v131 = vunpack.c.l.b16 %v53
    %v132 = vunpack.c.l.b16 %v54
    %v133 = vunpack.c.l.b16 %v55
    %v134 = vunpack.c.l.b16 %v56
    %v135 = vunpack.c.l.b16 %v57
    %v136 = vunpack.c.l.b16 %v58
    %v137 = vunpack.c.l.b16 %v59
    %v138 = vunpack.c.l.b16 %v60
    %v139 = vunpack.c.l.b16 %v61
    %v140 = vpack.c.b16 %v109, %v108
    %v141 = vpack.c.b16 %v111, %v110
    %v142 = vpack.c.b16 %v113, %v112
    %v143 = vpack.c.b16 %v115, %v114
    %v144 = vpack.c.b16 %v117, %v116
    %v145 = vpack.c.b16 %v119, %v118
    %v146 = vpack.c.b16 %v121, %v120
    %v147 = vpack.c.b16 %v123, %v122
    %v148 = vpack.c.b16 %v125, %v124
    %v149 = vpack.c.b16 %v127, %v126
    %v150 = vpack.c.b16 %v129, %v128
    %v151 = vpack.c.b16 %v131, %v130
    %v152 = vpack.c.b16 %v133, %v132
    %v153 = vpack.c.b16 %v135, %v134
    %v154 = vpack.c.b16 %v137, %v136
    %v155 = vpack.c.b16 %v139, %v138
    %172 = vmatprep.subr.bf16.mxu0 0
    %173 = vmatpush1.bf16.msra.mxu0 %v140
    %174 = vmatprep.subr.bf16.mxu0 0
    %175 = vmatpush1.bf16.msra.mxu0 %v141
    %176 = vmatprep.subr.bf16.mxu0 0
    %177 = vmatpush1.bf16.msra.mxu0 %v142
    %178 = vmatprep.subr.bf16.mxu0 0
    %179 = vmatpush1.bf16.msra.mxu0 %v143
    %180 = vmatprep.subr.bf16.mxu0 0
    %181 = vmatpush1.bf16.msra.mxu0 %v144
    %182 = vmatprep.subr.bf16.mxu0 0
    %183 = vmatpush1.bf16.msra.mxu0 %v145
    %184 = vmatprep.subr.bf16.mxu0 0
    %185 = vmatpush1.bf16.msra.mxu0 %v146
    %186 = vmatprep.subr.bf16.mxu0 0
    %187 = vmatpush1.bf16.msra.mxu0 %v147
    %188 = vmatprep.subr.bf16.mxu0 0
    %189 = vmatpush1.bf16.msra.mxu0 %v148
    %190 = vmatprep.subr.bf16.mxu0 0
    %191 = vmatpush1.bf16.msra.mxu0 %v149
    %192 = vmatprep.subr.bf16.mxu0 0
    %193 = vmatpush1.bf16.msra.mxu0 %v150
    %194 = vmatprep.subr.bf16.mxu0 0
    %195 = vmatpush1.bf16.msra.mxu0 %v151
    %196 = vmatprep.subr.bf16.mxu0 0
    %197 = vmatpush1.bf16.msra.mxu0 %v152
    %198 = vmatprep.subr.bf16.mxu0 0
    %199 = vmatpush1.bf16.msra.mxu0 %v153
    %200 = vmatprep.subr.bf16.mxu0 0
    %201 = vmatpush1.bf16.msra.mxu0 %v154
    %202 = vmatprep.subr.bf16.mxu0 0
    %203 = vmatpush1.bf16.msra.mxu0 %v155
    %204 = vmatprep.mubr.bf16.mxu0 %v73
    %205 = vmatmul.mubr.bf16.gmra.mrb[0].mxu0 %v72
    %v206 = vpop.f32.mrb[0].mxu0
    %v207 = vadd.f32 %v67, %v206
    %v208 = vpop.f32.mrb[0].mxu0
    %v209 = vpop.f32.mrb[0].mxu0
    %v210 = vpop.f32.mrb[0].mxu0
    %211 = vdwg.mxu0
    %212 = vst [vmem:[%s3] sm:$0xff] %v207
    // Predicated region
    $region18: #{linear_decoder.1} parent=1 // pred_check
      _
    $region19: #{linear_decoder.1} parent=1 // pred_check_branch
      %214 = sbr.rel (0) target = $region21
    $region20: #{linear_decoder.1} parent=1 // pred_region
      _
    $region21: #{linear_decoder.1} parent=1 // pred_fallthru
      _
    // Predicated region
    $region22: #{linear_decoder.1} parent=1 // pred_check
      _
    $region23: #{linear_decoder.1} parent=1 // pred_check_branch
      %216 = sbr.rel (0) target = $region25
    $region24: #{linear_decoder.1} parent=1 // pred_region
      _
    $region25: #{linear_decoder.1} parent=1 // pred_fallthru
      _
    %217 = vsyncpa [#allocation3], 1

</llo_original>
